<compile_context>
chip_gen: v5e
topology: v5e:2x2
jax: 0.10.0
libtpu: 0.0.40
codegen_flags: <defaults>
</compile_context>

<pallas_src>
import jax
import jax.numpy as jnp
from jax import lax
from jax.experimental import pallas as pl
from jax.experimental.pallas import tpu as pltpu

# ---- hyperparameters (match the nn.Module constructor args) ----
B = 2
IN_CH = 8            # in_channels
HID = 16             # hidden_dim
OUT_CH = 8           # out_channels (== in_channels so x + residual(y) is valid)
SKIP_CH = 8          # skip_channels
DIL = 2              # dilation
KS = 3               # kernel_size (stride = (KS-1)//2 = 1 keeps sequence length)
PAD = 2              # module `padding` (time crop before the skip conv)
T = 128              # sequence length (lane-dense: one full 128-lane vreg row)
DW_PAD = (KS - 1) * DIL // 2   # depthwise dilated conv padding
BN_EPS = 1e-5
COMB = OUT_CH + SKIP_CH


def _gelu(x):
    # tanh-form GELU: the transcendental lands in the (otherwise idle) EUP slot.
    # NOTE: PyTorch nn.GELU default is the exact erf form; the tanh approximation
    # differs by <~3e-3 and is covered by the 1e-2 test tolerance.
    c = 0.7978845608028654  # sqrt(2/pi)
    return 0.5 * x * (1.0 + jnp.tanh(c * (x + 0.044715 * x * x * x)))


def _residual_kernel(x_ref, wstack_ref, bcorr_ref, mask_ref, sw1_ref, sw2_ref,
                     wcb_ref, bcb_ref, out_ref):
    # One grid step == one batch element.  Activations are channels-major with
    # time on the lane axis: x (Cin, T), h/y (HID, T), out (COMB, T).
    x = x_ref[...]                                                    # (Cin, T)

    # Stack the KS dilated taps as lane-rolls of x (one XLU op per tap); the
    # wrapped-around / out-of-sequence lanes are zeroed by the precomputed mask.
    shifted = []
    for k in range(KS):
        off = k * DIL - DW_PAD                                        # -2, 0, +2
        if off == 0:
            shifted.append(x)
        else:
            shifted.append(pltpu.roll(x, shift=(-off) % T, axis=1))   # lane t <- x[:, t+off]
    xs = jnp.concatenate(shifted, axis=0) * mask_ref[...]             # (KS*Cin, T)

    # Fused (1x1 conv ∘ eval-BN ∘ depthwise dilated conv): one K = KS*Cin matmul
    # plus the precomputed bias-correction term for the zero-padded taps.
    h = jnp.dot(wstack_ref[...], xs,
                preferred_element_type=jnp.float32) + bcorr_ref[...]  # (HID, T)
    y = _gelu(h)
    # TODO(synk): training-mode Dropout(0.5) / BatchNorm batch statistics are not
    # implemented; eval-mode semantics (identity dropout, running stats) are used.

    # SE module: mean over time is a lane reduction; keep the bottleneck matmuls
    # lane-dense (N = T) by broadcasting the pooled vector over lanes first.
    ybar = jnp.broadcast_to(jnp.sum(y, axis=1, keepdims=True) * (1.0 / T), (HID, T))
    s1 = _gelu(jnp.dot(sw1_ref[...], ybar,
                       preferred_element_type=jnp.float32))           # (HID//4, T)
    gate = jax.nn.sigmoid(jnp.dot(sw2_ref[...], s1,
                                  preferred_element_type=jnp.float32))  # (HID, T)
    y = y * gate

    # Fused residual + skip 1x1 projections (one matmul) -> GELU -> two direct
    # sub-block stores (no concatenate temporary).  The skip half is cropped in
    # the wrapper; exact because the skip conv is pointwise in time.
    g = _gelu(jnp.dot(wcb_ref[...], y,
                      preferred_element_type=jnp.float32) + bcb_ref[...])  # (COMB, T)
    out_ref[:OUT_CH, :] = x + g[:OUT_CH, :]
    out_ref[OUT_CH:, :] = g[OUT_CH:, :]


def residual_forward(x_nct, params):
    (w1, gamma, beta, rmean, rvar, w_dw, se_w1, se_w2,
     w_res, b_res, w_skip, b_skip) = params
    x = x_nct.astype(jnp.float32)                        # already NCL == (B, Cin, T)

    # Fold eval-mode BN scale into the 1x1 conv weights; keep only the shift.
    bn_scale = gamma / jnp.sqrt(rvar + BN_EPS)           # (HID,)
    w1f = w1 * bn_scale[:, None]                         # (HID, Cin)
    bn_shift = beta - rmean * bn_scale                   # (HID,)
    wdw = jnp.transpose(w_dw[:, 0, :], (1, 0))           # (KS, HID)

    # Per-tap validity mask over time (identical for every batch element).
    offs = jnp.arange(KS) * DIL - DW_PAD                 # (KS,)
    tt = jnp.arange(T)
    mask = ((tt[None, :] + offs[:, None] >= 0) &
            (tt[None, :] + offs[:, None] < T)).astype(jnp.float32)          # (KS, T)
    mask_full = jnp.repeat(mask, IN_CH, axis=0)          # (KS*Cin, T), row order == wstack cols

    # Fuse depthwise taps into the BN-folded 1x1 conv: Wstack[:, k*Cin:(k+1)*Cin] = wdw_k ⊙ W1f.
    wstack = jnp.concatenate([w1f * wdw[k][:, None] for k in range(KS)], axis=1)  # (HID, KS*Cin)
    # Folded-BN bias enters once per *valid* tap: bcorr[c,t] = shift[c] * sum_k wdw[k,c]*mask[k,t].
    bcorr = bn_shift[:, None] * jnp.einsum('kc,kt->ct', wdw, mask)                 # (HID, T)

    wcomb = jnp.concatenate([w_res, w_skip], axis=0)     # (COMB, HID)
    bcomb = jnp.concatenate([b_res, b_skip])[:, None]    # (COMB, 1)

    out = pl.pallas_call(
        _residual_kernel,
        out_shape=jax.ShapeDtypeStruct((B, COMB, T), jnp.float32),
        grid=(B,),
        in_specs=[
            pl.BlockSpec((None, IN_CH, T), lambda b: (b, 0, 0)),      # x: one batch per step
            pl.BlockSpec((HID, KS * IN_CH), lambda b: (0, 0)),        # fused conv weights
            pl.BlockSpec((HID, T), lambda b: (0, 0)),                 # bias correction
            pl.BlockSpec((KS * IN_CH, T), lambda b: (0, 0)),          # tap validity mask
            pl.BlockSpec((HID // 4, HID), lambda b: (0, 0)),          # SE fc1
            pl.BlockSpec((HID, HID // 4), lambda b: (0, 0)),          # SE fc2
            pl.BlockSpec((COMB, HID), lambda b: (0, 0)),              # residual|skip weights
            pl.BlockSpec((COMB, 1), lambda b: (0, 0)),                # residual|skip bias
        ],
        out_specs=pl.BlockSpec((None, COMB, T), lambda b: (b, 0, 0)),
        compiler_params=pltpu.CompilerParams(dimension_semantics=("parallel",)),
    )(x, wstack, bcorr, mask_full, se_w1, se_w2, wcomb, bcomb)

    z = out[:, :OUT_CH, :]                               # (B, OUT_CH, T), already NCL
    # skip conv is 1x1 (pointwise in time) -> cropping after conv+GELU == cropping y first
    s = out[:, OUT_CH:, PAD:T - PAD]                     # (B, SKIP_CH, T - 2*PAD)
    return z, s


def ref_forward(x_nct, params):
    """Pure-JAX reference mirroring the PyTorch forward (eval mode, exact erf GELU)."""
    (w1, gamma, beta, rmean, rvar, w_dw, se_w1, se_w2,
     w_res, b_res, w_skip, b_skip) = params
    gelu = lambda v: jax.nn.gelu(v, approximate=False)
    h = jnp.einsum('hc,bct->bht', w1, x_nct)
    h = ((h - rmean[None, :, None]) / jnp.sqrt(rvar + BN_EPS)[None, :, None]
         * gamma[None, :, None] + beta[None, :, None])
    h = lax.conv_general_dilated(
        h, w_dw, window_strides=((KS - 1) // 2,), padding=[(DW_PAD, DW_PAD)],
        rhs_dilation=(DIL,), feature_group_count=HID,
        dimension_numbers=('NCH', 'OIH', 'NCH'))
    y = gelu(h)
    ybar = jnp.mean(y, axis=2)                                        # (B, HID)
    gate = jax.nn.sigmoid(gelu(ybar @ se_w1.T) @ se_w2.T)
    y = y * gate[:, :, None]
    r = gelu(jnp.einsum('oh,bht->bot', w_res, y) + b_res[None, :, None])
    z = x_nct + r
    yc = y[..., PAD:-PAD]
    s = gelu(jnp.einsum('oh,bht->bot', w_skip, yc) + b_skip[None, :, None])
    return z, s


if __name__ == "__main__":
    key = jax.random.PRNGKey(0)
    ks = jax.random.split(key, 13)
    params = (
        0.3 * jax.random.normal(ks[0], (HID, IN_CH), jnp.float32),        # conv1 weight (1x1, no bias)
        1.0 + 0.1 * jax.random.normal(ks[1], (HID,), jnp.float32),        # BN gamma
        0.1 * jax.random.normal(ks[2], (HID,), jnp.float32),              # BN beta
        0.1 * jax.random.normal(ks[3], (HID,), jnp.float32),              # BN running_mean
        jax.random.uniform(ks[4], (HID,), jnp.float32, 0.5, 1.5),         # BN running_var
        0.3 * jax.random.normal(ks[5], (HID, 1, KS), jnp.float32),        # depthwise conv weight
        0.3 * jax.random.normal(ks[6], (HID // 4, HID), jnp.float32),     # SE fc1 weight
        0.3 * jax.random.normal(ks[7], (HID, HID // 4), jnp.float32),     # SE fc2 weight
        0.3 * jax.random.normal(ks[8], (OUT_CH, HID), jnp.float32),       # residual conv weight
        0.1 * jax.random.normal(ks[9], (OUT_CH,), jnp.float32),           # residual conv bias
        0.3 * jax.random.normal(ks[10], (SKIP_CH, HID), jnp.float32),     # skip conv weight
        0.1 * jax.random.normal(ks[11], (SKIP_CH,), jnp.float32),         # skip conv bias
    )
    x = jax.random.normal(ks[12], (B, IN_CH, T), jnp.float32)

    z, s = jax.jit(residual_forward)(x, params)
    jax.block_until_ready((z, s))

    z_ref, s_ref = ref_forward(x, params)
    assert z.shape == (B, IN_CH, T) and s.shape == (B, SKIP_CH, T - 2 * PAD)
    assert jnp.allclose(z, z_ref, rtol=1e-2, atol=1e-2)
    assert jnp.allclose(s, s_ref, rtol=1e-2, atol=1e-2)
    print("KERNEL_OK")
</pallas_src>

<mosaic_0001>
module attributes {stable_mosaic.version = 11 : i64} {
  func.func @_residual_kernel(%arg0: i32, %arg1: memref<1x8x128xf32, #tpu.memory_space<vmem>>, %arg2: memref<16x24xf32, #tpu.memory_space<vmem>>, %arg3: memref<16x128xf32, #tpu.memory_space<vmem>>, %arg4: memref<24x128xf32, #tpu.memory_space<vmem>>, %arg5: memref<4x16xf32, #tpu.memory_space<vmem>>, %arg6: memref<16x4xf32, #tpu.memory_space<vmem>>, %arg7: memref<16x16xf32, #tpu.memory_space<vmem>>, %arg8: memref<16x1xf32, #tpu.memory_space<vmem>>, %arg9: memref<1x16x128xf32, #tpu.memory_space<vmem>>) attributes {dimension_semantics = [#tpu.dimension_semantics<parallel>], iteration_bounds = array<i64: 2>, scalar_prefetch = 0 : i64, scratch_operands = 0 : i64, tpu.core_type = #tpu.core_type<tc>, window_params = [{transform_indices = @transform_0, window_bounds = array<i64: 1, 8, 128>}, {pipeline_mode = #tpu.pipeline_mode<synchronous>, transform_indices = @transform_1, window_bounds = array<i64: 16, 24>}, {pipeline_mode = #tpu.pipeline_mode<synchronous>, transform_indices = @transform_2, window_bounds = array<i64: 16, 128>}, {pipeline_mode = #tpu.pipeline_mode<synchronous>, transform_indices = @transform_3, window_bounds = array<i64: 24, 128>}, {pipeline_mode = #tpu.pipeline_mode<synchronous>, transform_indices = @transform_4, window_bounds = array<i64: 4, 16>}, {pipeline_mode = #tpu.pipeline_mode<synchronous>, transform_indices = @transform_5, window_bounds = array<i64: 16, 4>}, {pipeline_mode = #tpu.pipeline_mode<synchronous>, transform_indices = @transform_6, window_bounds = array<i64: 16, 16>}, {pipeline_mode = #tpu.pipeline_mode<synchronous>, transform_indices = @transform_7, window_bounds = array<i64: 16, 1>}, {transform_indices = @transform_8, window_bounds = array<i64: 1, 16, 128>}]} {
    %c0 = arith.constant 0 : index
    %c0_0 = arith.constant 0 : index
    %c0_1 = arith.constant 0 : index
    %0 = vector.load %arg1[%c0, %c0_0, %c0_1] : memref<1x8x128xf32, #tpu.memory_space<vmem>>, vector<1x8x128xf32>
    %1 = vector.shape_cast %0 : vector<1x8x128xf32> to vector<8x128xf32>
    %c2_i32 = arith.constant 2 : i32
    %2 = tpu.dynamic_rotate %1 by %c2_i32 dim 1 : vector<8x128xf32>, i32 -> vector<8x128xf32>
    %c126_i32 = arith.constant 126 : i32
    %3 = tpu.dynamic_rotate %1 by %c126_i32 dim 1 : vector<8x128xf32>, i32 -> vector<8x128xf32>
    %4 = tpu.concatenate %2, %1, %3 in 0 : vector<8x128xf32>, vector<8x128xf32>, vector<8x128xf32> -> vector<24x128xf32>
    %c0_2 = arith.constant 0 : index
    %c0_3 = arith.constant 0 : index
    %5 = vector.load %arg4[%c0_2, %c0_3] : memref<24x128xf32, #tpu.memory_space<vmem>>, vector<24x128xf32>
    %6 = arith.mulf %4, %5 : vector<24x128xf32>
    %c0_4 = arith.constant 0 : index
    %c0_5 = arith.constant 0 : index
    %7 = vector.load %arg2[%c0_4, %c0_5] : memref<16x24xf32, #tpu.memory_space<vmem>>, vector<16x24xf32>
    %cst = arith.constant dense<0.000000e+00> : vector<16x128xf32>
    %8 = tpu.matmul %7, %6, %cst {dimension_numbers = #tpu.dot_dimension_numbers<[1], [0], [0], [1], [0, 0, 1, 1], [], []>} : vector<16x24xf32>, vector<24x128xf32>, vector<16x128xf32> -> vector<16x128xf32>
    %c0_6 = arith.constant 0 : index
    %c0_7 = arith.constant 0 : index
    %9 = vector.load %arg3[%c0_6, %c0_7] : memref<16x128xf32, #tpu.memory_space<vmem>>, vector<16x128xf32>
    %10 = arith.addf %8, %9 : vector<16x128xf32>
    %cst_8 = arith.constant 5.000000e-01 : f32
    %11 = vector.broadcast %cst_8 : f32 to vector<16x128xf32>
    %12 = arith.mulf %11, %10 : vector<16x128xf32>
    %cst_9 = arith.constant 4.471500e-02 : f32
    %13 = vector.broadcast %cst_9 : f32 to vector<16x128xf32>
    %14 = arith.mulf %13, %10 : vector<16x128xf32>
    %15 = arith.mulf %14, %10 : vector<16x128xf32>
    %16 = arith.mulf %15, %10 : vector<16x128xf32>
    %17 = arith.addf %10, %16 : vector<16x128xf32>
    %cst_10 = arith.constant 0.797884583 : f32
    %18 = vector.broadcast %cst_10 : f32 to vector<16x128xf32>
    %19 = arith.mulf %18, %17 : vector<16x128xf32>
    %20 = math.tanh %19 : vector<16x128xf32>
    %cst_11 = arith.constant 1.000000e+00 : f32
    %21 = vector.broadcast %cst_11 : f32 to vector<16x128xf32>
    %22 = arith.addf %21, %20 : vector<16x128xf32>
    %23 = arith.mulf %12, %22 : vector<16x128xf32>
    %cst_12 = arith.constant dense<0.000000e+00> : vector<16xf32>
    %24 = vector.multi_reduction <add>, %23, %cst_12 [1] : vector<16x128xf32> to vector<16xf32>
    %25 = vector.shape_cast %24 : vector<16xf32> to vector<16x1xf32>
    %cst_13 = arith.constant 7.812500e-03 : f32
    %26 = vector.broadcast %cst_13 : f32 to vector<16x1xf32>
    %27 = arith.mulf %25, %26 : vector<16x1xf32>
    %28 = vector.shape_cast %27 : vector<16x1xf32> to vector<16x1xf32>
    %29 = vector.broadcast %28 : vector<16x1xf32> to vector<16x128xf32>
    %c0_14 = arith.constant 0 : index
    %c0_15 = arith.constant 0 : index
    %30 = vector.load %arg5[%c0_14, %c0_15] : memref<4x16xf32, #tpu.memory_space<vmem>>, vector<4x16xf32>
    %cst_16 = arith.constant dense<0.000000e+00> : vector<4x128xf32>
    %31 = tpu.matmul %30, %29, %cst_16 {dimension_numbers = #tpu.dot_dimension_numbers<[1], [0], [0], [1], [0, 0, 1, 1], [], []>} : vector<4x16xf32>, vector<16x128xf32>, vector<4x128xf32> -> vector<4x128xf32>
    %cst_17 = arith.constant 5.000000e-01 : f32
    %32 = vector.broadcast %cst_17 : f32 to vector<4x128xf32>
    %33 = arith.mulf %32, %31 : vector<4x128xf32>
    %cst_18 = arith.constant 4.471500e-02 : f32
    %34 = vector.broadcast %cst_18 : f32 to vector<4x128xf32>
    %35 = arith.mulf %34, %31 : vector<4x128xf32>
    %36 = arith.mulf %35, %31 : vector<4x128xf32>
    %37 = arith.mulf %36, %31 : vector<4x128xf32>
    %38 = arith.addf %31, %37 : vector<4x128xf32>
    %cst_19 = arith.constant 0.797884583 : f32
    %39 = vector.broadcast %cst_19 : f32 to vector<4x128xf32>
    %40 = arith.mulf %39, %38 : vector<4x128xf32>
    %41 = math.tanh %40 : vector<4x128xf32>
    %cst_20 = arith.constant 1.000000e+00 : f32
    %42 = vector.broadcast %cst_20 : f32 to vector<4x128xf32>
    %43 = arith.addf %42, %41 : vector<4x128xf32>
    %44 = arith.mulf %33, %43 : vector<4x128xf32>
    %c0_21 = arith.constant 0 : index
    %c0_22 = arith.constant 0 : index
    %45 = vector.load %arg6[%c0_21, %c0_22] : memref<16x4xf32, #tpu.memory_space<vmem>>, vector<16x4xf32>
    %cst_23 = arith.constant dense<0.000000e+00> : vector<16x128xf32>
    %46 = tpu.matmul %45, %44, %cst_23 {dimension_numbers = #tpu.dot_dimension_numbers<[1], [0], [0], [1], [0, 0, 1, 1], [], []>} : vector<16x4xf32>, vector<4x128xf32>, vector<16x128xf32> -> vector<16x128xf32>
    %47 = arith.negf %46 : vector<16x128xf32>
    %48 = math.exp %47 : vector<16x128xf32>
    %cst_24 = arith.constant 1.000000e+00 : f32
    %49 = vector.broadcast %cst_24 : f32 to vector<16x128xf32>
    %50 = arith.addf %49, %48 : vector<16x128xf32>
    %51 = arith.divf %49, %50 : vector<16x128xf32>
    %52 = arith.mulf %23, %51 : vector<16x128xf32>
    %c0_25 = arith.constant 0 : index
    %c0_26 = arith.constant 0 : index
    %53 = vector.load %arg7[%c0_25, %c0_26] : memref<16x16xf32, #tpu.memory_space<vmem>>, vector<16x16xf32>
    %cst_27 = arith.constant dense<0.000000e+00> : vector<16x128xf32>
    %54 = tpu.matmul %53, %52, %cst_27 {dimension_numbers = #tpu.dot_dimension_numbers<[1], [0], [0], [1], [0, 0, 1, 1], [], []>} : vector<16x16xf32>, vector<16x128xf32>, vector<16x128xf32> -> vector<16x128xf32>
    %c0_28 = arith.constant 0 : index
    %c0_29 = arith.constant 0 : index
    %55 = vector.load %arg8[%c0_28, %c0_29] : memref<16x1xf32, #tpu.memory_space<vmem>>, vector<16x1xf32>
    %56 = vector.broadcast %55 : vector<16x1xf32> to vector<16x128xf32>
    %57 = arith.addf %54, %56 : vector<16x128xf32>
    %cst_30 = arith.constant 5.000000e-01 : f32
    %58 = vector.broadcast %cst_30 : f32 to vector<16x128xf32>
    %59 = arith.mulf %58, %57 : vector<16x128xf32>
    %cst_31 = arith.constant 4.471500e-02 : f32
    %60 = vector.broadcast %cst_31 : f32 to vector<16x128xf32>
    %61 = arith.mulf %60, %57 : vector<16x128xf32>
    %62 = arith.mulf %61, %57 : vector<16x128xf32>
    %63 = arith.mulf %62, %57 : vector<16x128xf32>
    %64 = arith.addf %57, %63 : vector<16x128xf32>
    %cst_32 = arith.constant 0.797884583 : f32
    %65 = vector.broadcast %cst_32 : f32 to vector<16x128xf32>
    %66 = arith.mulf %65, %64 : vector<16x128xf32>
    %67 = math.tanh %66 : vector<16x128xf32>
    %cst_33 = arith.constant 1.000000e+00 : f32
    %68 = vector.broadcast %cst_33 : f32 to vector<16x128xf32>
    %69 = arith.addf %68, %67 : vector<16x128xf32>
    %70 = arith.mulf %59, %69 : vector<16x128xf32>
    %71 = vector.extract_strided_slice %70 {offsets = [0, 0], sizes = [8, 128], strides = [1, 1]} : vector<16x128xf32> to vector<8x128xf32>
    %72 = arith.addf %1, %71 : vector<8x128xf32>
    %c0_34 = arith.constant 0 : index
    %c0_35 = arith.constant 0 : index
    %c0_36 = arith.constant 0 : index
    %73 = vector.load %arg9[%c0_34, %c0_35, %c0_36] : memref<1x16x128xf32, #tpu.memory_space<vmem>>, vector<1x8x128xf32>
    %74 = vector.shape_cast %73 : vector<1x8x128xf32> to vector<8x128xf32>
    %75 = vector.shape_cast %72 : vector<8x128xf32> to vector<1x8x128xf32>
    tpu.vector_store %arg9[%c0_34, %c0_35, %c0_36], %75 {strides = array<i32>} : memref<1x16x128xf32, #tpu.memory_space<vmem>>, vector<1x8x128xf32>,
    %76 = vector.extract_strided_slice %70 {offsets = [8, 0], sizes = [8, 128], strides = [1, 1]} : vector<16x128xf32> to vector<8x128xf32>
    %c0_37 = arith.constant 0 : index
    %c8 = arith.constant 8 : index
    %c0_38 = arith.constant 0 : index
    %77 = vector.load %arg9[%c0_37, %c8, %c0_38] : memref<1x16x128xf32, #tpu.memory_space<vmem>>, vector<1x8x128xf32>
    %78 = vector.shape_cast %77 : vector<1x8x128xf32> to vector<8x128xf32>
    %79 = vector.shape_cast %76 : vector<8x128xf32> to vector<1x8x128xf32>
    tpu.vector_store %arg9[%c0_37, %c8, %c0_38], %79 {strides = array<i32>} : memref<1x16x128xf32, #tpu.memory_space<vmem>>, vector<1x8x128xf32>,
    return
  }
  func.func @transform_0(%arg0: i32) -> (i32, i32, i32) {
    %c0_i32 = arith.constant 0 : i32
    %c0_i32_0 = arith.constant 0 : i32
    %c0_i32_1 = arith.constant 0 : i32
    return %arg0, %c0_i32, %c0_i32_0 : i32, i32, i32
  }
  func.func @transform_1(%arg0: i32) -> (i32, i32) {
    %c0_i32 = arith.constant 0 : i32
    %c0_i32_0 = arith.constant 0 : i32
    %c0_i32_1 = arith.constant 0 : i32
    return %c0_i32, %c0_i32_0 : i32, i32
  }
  func.func @transform_2(%arg0: i32) -> (i32, i32) {
    %c0_i32 = arith.constant 0 : i32
    %c0_i32_0 = arith.constant 0 : i32
    %c0_i32_1 = arith.constant 0 : i32
    return %c0_i32, %c0_i32_0 : i32, i32
  }
  func.func @transform_3(%arg0: i32) -> (i32, i32) {
    %c0_i32 = arith.constant 0 : i32
    %c0_i32_0 = arith.constant 0 : i32
    %c0_i32_1 = arith.constant 0 : i32
    return %c0_i32, %c0_i32_0 : i32, i32
  }
  func.func @transform_4(%arg0: i32) -> (i32, i32) {
    %c0_i32 = arith.constant 0 : i32
    %c0_i32_0 = arith.constant 0 : i32
    %c0_i32_1 = arith.constant 0 : i32
    return %c0_i32, %c0_i32_0 : i32, i32
  }
  func.func @transform_5(%arg0: i32) -> (i32, i32) {
    %c0_i32 = arith.constant 0 : i32
    %c0_i32_0 = arith.constant 0 : i32
    %c0_i32_1 = arith.constant 0 : i32
    return %c0_i32, %c0_i32_0 : i32, i32
  }
  func.func @transform_6(%arg0: i32) -> (i32, i32) {
    %c0_i32 = arith.constant 0 : i32
    %c0_i32_0 = arith.constant 0 : i32
    %c0_i32_1 = arith.constant 0 : i32
    return %c0_i32, %c0_i32_0 : i32, i32
  }
  func.func @transform_7(%arg0: i32) -> (i32, i32) {
    %c0_i32 = arith.constant 0 : i32
    %c0_i32_0 = arith.constant 0 : i32
    %c0_i32_1 = arith.constant 0 : i32
    return %c0_i32, %c0_i32_0 : i32, i32
  }
  func.func @transform_8(%arg0: i32) -> (i32, i32, i32) {
    %c0_i32 = arith.constant 0 : i32
    %c0_i32_0 = arith.constant 0 : i32
    %c0_i32_1 = arith.constant 0 : i32
    return %arg0, %c0_i32, %c0_i32_0 : i32, i32, i32
  }
}

</mosaic_0001>

<llo_original>
// kernel: residual_forward.1
$region0: #{residual_forward.1}
  #allocation0 [shape = 'u32[]', space=smem, size = 0x4, offset = 0x4, fixed_abs, tag = 'smem constant byte address 0x4 - core index']
  #allocation1 [shape = 'u32[72,128]{1,0:T(1,128)}', space=vmem, size = 0x9000, scoped, tag = 'internal scratch']
  %s0 = inlined_call_operand.vmem [shape: f32[2,8,128], index: 0, kind: input, shape index: {}]
  %s1 = inlined_call_operand.vmem [shape: f32[16,24], index: 1, kind: input, shape index: {}]
  %s2 = inlined_call_operand.vmem [shape: f32[16,128], index: 2, kind: input, shape index: {}]
  %s3 = inlined_call_operand.vmem [shape: f32[24,128], index: 3, kind: input, shape index: {}]
  %s4 = inlined_call_operand.vmem [shape: f32[4,16], index: 4, kind: input, shape index: {}]
  %s5 = inlined_call_operand.vmem [shape: f32[16,4], index: 5, kind: input, shape index: {}]
  %s6 = inlined_call_operand.vmem [shape: f32[16,16], index: 6, kind: input, shape index: {}]
  %s7 = inlined_call_operand.vmem [shape: f32[16,1], index: 7, kind: input, shape index: {}]
  %s8 = inlined_call_operand.vmem [shape: f32[2,16,128], index: 8, kind: output, shape index: {}]
  %s9 = sld [smem:[#allocation0]]
  $region65: #{residual_forward.1} parent=0
    _
  %s11 = ssub.s32 1, %s9
  %s12 = scalar_select 0, %s11, %s9
  loop: start=0, step=1, limit=4
  $region2: #{residual_forward.1} parent=0 // loop_pre_header
    _
  $region3: #{residual_forward.1} parent=0 // loop_header
    %s14 = sphi 0, %s18
    %p15 = scmp.ge.s32.totalorder %s14, 4
    %s24 = sphi 0, %s26
    %s27 = sphi 0, %s24
    %s28 = sphi 0, %s27
    %s44 = sphi 0, %s28
    %s48 = sphi 0, %s48
    %s50 = sphi 0, %s48
    %s51 = sphi 0, %s50
    %s65 = sphi 0, %s51
    %s69 = sphi 0, %s69
    %s71 = sphi 0, %s69
    %s72 = sphi 0, %s71
    %s86 = sphi 0, %s72
    %s90 = sphi 0, %s90
    %s92 = sphi 0, %s90
    %s93 = sphi 0, %s92
    %s107 = sphi 0, %s93
    %s111 = sphi 0, %s111
    %s113 = sphi 0, %s111
    %s114 = sphi 0, %s113
    %s128 = sphi 0, %s114
    %s132 = sphi 0, %s132
    %s134 = sphi 0, %s132
    %s135 = sphi 0, %s134
    %s149 = sphi 0, %s135
    %s153 = sphi 0, %s153
    %s155 = sphi 0, %s153
    %s156 = sphi 0, %s155
    %s170 = sphi 0, %s156
    %s174 = sphi 0, %s174
    %s176 = sphi 0, %s174
    %s177 = sphi 0, %s176
    %s191 = sphi 0, %s177
    %s197 = sphi 0, %s199
    %s200 = sphi 0, %s197
    %s201 = sphi 0, %s200
    %s217 = sphi 0, %s201
  $region4: #{residual_forward.1} parent=0 // loop_header_branch
    %17 = sbr.rel (%p15) target = $region8
  $region5: #{residual_forward.1} parent=0 // loop_body
    %s19 = ssub.s32 %s14, 1
    %s20 = ssub.s32 %s14, 2
    %s21 = sadd.s32 %s14, 1
    %s22 = ssub.s32 %s14, %s21
    %p23 = scmp.eq.s32.totalorder %s22, 0
    %s25 = sadd.s32 %s24, 1
    %s26 = scalar_select %p23, %s24, %s25
    %p29 = pneg %p23
    %p30 = scmp.eq.s32.totalorder %s14, 1
    %p31 = por %p29, %p30
    %p32 = scmp.ne.s32.totalorder %s24, %s27
    %p33 = scmp.eq.s32.totalorder %s14, 0
    %p34 = por %p32, %p33
    %p35 = scmp.ne.s32.totalorder %s24, %s27
    %p36 = scmp.eq.s32.totalorder %s19, 1
    %p37 = por %p35, %p36
    %p38 = scmp.ne.s32.totalorder %s27, %s28
    %p39 = scmp.eq.s32.totalorder %s19, 0
    %p40 = por %p38, %p39
    %p41 = scmp.ne.s32.totalorder %s27, %s28
    %p42 = scmp.eq.s32.totalorder %s20, 1
    %p43 = por %p41, %p42
    %p45 = scmp.ne.s32.totalorder %s28, %s44
    %p46 = scmp.eq.s32.totalorder %s20, 0
    %p47 = por %p45, %p46
    %s49 = sadd.s32 %s48, 1
    %p52 = scmp.eq.s32.totalorder %s14, 1
    %p53 = scmp.ne.s32.totalorder %s48, %s50
    %p54 = scmp.eq.s32.totalorder %s14, 0
    %p55 = por %p53, %p54
    %p56 = scmp.ne.s32.totalorder %s48, %s50
    %p57 = scmp.eq.s32.totalorder %s19, 1
    %p58 = por %p56, %p57
    %p59 = scmp.ne.s32.totalorder %s50, %s51
    %p60 = scmp.eq.s32.totalorder %s19, 0
    %p61 = por %p59, %p60
    %p62 = scmp.ne.s32.totalorder %s50, %s51
    %p63 = scmp.eq.s32.totalorder %s20, 1
    %p64 = por %p62, %p63
    %p66 = scmp.ne.s32.totalorder %s51, %s65
    %p67 = scmp.eq.s32.totalorder %s20, 0
    %p68 = por %p66, %p67
    %s70 = sadd.s32 %s69, 1
    %p73 = scmp.eq.s32.totalorder %s14, 1
    %p74 = scmp.ne.s32.totalorder %s69, %s71
    %p75 = scmp.eq.s32.totalorder %s14, 0
    %p76 = por %p74, %p75
    %p77 = scmp.ne.s32.totalorder %s69, %s71
    %p78 = scmp.eq.s32.totalorder %s19, 1
    %p79 = por %p77, %p78
    %p80 = scmp.ne.s32.totalorder %s71, %s72
    %p81 = scmp.eq.s32.totalorder %s19, 0
    %p82 = por %p80, %p81
    %p83 = scmp.ne.s32.totalorder %s71, %s72
    %p84 = scmp.eq.s32.totalorder %s20, 1
    %p85 = por %p83, %p84
    %p87 = scmp.ne.s32.totalorder %s72, %s86
    %p88 = scmp.eq.s32.totalorder %s20, 0
    %p89 = por %p87, %p88
    %s91 = sadd.s32 %s90, 1
    %p94 = scmp.eq.s32.totalorder %s14, 1
    %p95 = scmp.ne.s32.totalorder %s90, %s92
    %p96 = scmp.eq.s32.totalorder %s14, 0
    %p97 = por %p95, %p96
    %p98 = scmp.ne.s32.totalorder %s90, %s92
    %p99 = scmp.eq.s32.totalorder %s19, 1
    %p100 = por %p98, %p99
    %p101 = scmp.ne.s32.totalorder %s92, %s93
    %p102 = scmp.eq.s32.totalorder %s19, 0
    %p103 = por %p101, %p102
    %p104 = scmp.ne.s32.totalorder %s92, %s93
    %p105 = scmp.eq.s32.totalorder %s20, 1
    %p106 = por %p104, %p105
    %p108 = scmp.ne.s32.totalorder %s93, %s107
    %p109 = scmp.eq.s32.totalorder %s20, 0
    %p110 = por %p108, %p109
    %s112 = sadd.s32 %s111, 1
    %p115 = scmp.eq.s32.totalorder %s14, 1
    %p116 = scmp.ne.s32.totalorder %s111, %s113
    %p117 = scmp.eq.s32.totalorder %s14, 0
    %p118 = por %p116, %p117
    %p119 = scmp.ne.s32.totalorder %s111, %s113
    %p120 = scmp.eq.s32.totalorder %s19, 1
    %p121 = por %p119, %p120
    %p122 = scmp.ne.s32.totalorder %s113, %s114
    %p123 = scmp.eq.s32.totalorder %s19, 0
    %p124 = por %p122, %p123
    %p125 = scmp.ne.s32.totalorder %s113, %s114
    %p126 = scmp.eq.s32.totalorder %s20, 1
    %p127 = por %p125, %p126
    %p129 = scmp.ne.s32.totalorder %s114, %s128
    %p130 = scmp.eq.s32.totalorder %s20, 0
    %p131 = por %p129, %p130
    %s133 = sadd.s32 %s132, 1
    %p136 = scmp.eq.s32.totalorder %s14, 1
    %p137 = scmp.ne.s32.totalorder %s132, %s134
    %p138 = scmp.eq.s32.totalorder %s14, 0
    %p139 = por %p137, %p138
    %p140 = scmp.ne.s32.totalorder %s132, %s134
    %p141 = scmp.eq.s32.totalorder %s19, 1
    %p142 = por %p140, %p141
    %p143 = scmp.ne.s32.totalorder %s134, %s135
    %p144 = scmp.eq.s32.totalorder %s19, 0
    %p145 = por %p143, %p144
    %p146 = scmp.ne.s32.totalorder %s134, %s135
    %p147 = scmp.eq.s32.totalorder %s20, 1
    %p148 = por %p146, %p147
    %p150 = scmp.ne.s32.totalorder %s135, %s149
    %p151 = scmp.eq.s32.totalorder %s20, 0
    %p152 = por %p150, %p151
    %s154 = sadd.s32 %s153, 1
    %p157 = scmp.eq.s32.totalorder %s14, 1
    %p158 = scmp.ne.s32.totalorder %s153, %s155
    %p159 = scmp.eq.s32.totalorder %s14, 0
    %p160 = por %p158, %p159
    %p161 = scmp.ne.s32.totalorder %s153, %s155
    %p162 = scmp.eq.s32.totalorder %s19, 1
    %p163 = por %p161, %p162
    %p164 = scmp.ne.s32.totalorder %s155, %s156
    %p165 = scmp.eq.s32.totalorder %s19, 0
    %p166 = por %p164, %p165
    %p167 = scmp.ne.s32.totalorder %s155, %s156
    %p168 = scmp.eq.s32.totalorder %s20, 1
    %p169 = por %p167, %p168
    %p171 = scmp.ne.s32.totalorder %s156, %s170
    %p172 = scmp.eq.s32.totalorder %s20, 0
    %p173 = por %p171, %p172
    %s175 = sadd.s32 %s174, 1
    %p178 = scmp.eq.s32.totalorder %s14, 1
    %p179 = scmp.ne.s32.totalorder %s174, %s176
    %p180 = scmp.eq.s32.totalorder %s14, 0
    %p181 = por %p179, %p180
    %p182 = scmp.ne.s32.totalorder %s174, %s176
    %p183 = scmp.eq.s32.totalorder %s19, 1
    %p184 = por %p182, %p183
    %p185 = scmp.ne.s32.totalorder %s176, %s177
    %p186 = scmp.eq.s32.totalorder %s19, 0
    %p187 = por %p185, %p186
    %p188 = scmp.ne.s32.totalorder %s176, %s177
    %p189 = scmp.eq.s32.totalorder %s20, 1
    %p190 = por %p188, %p189
    %p192 = scmp.ne.s32.totalorder %s177, %s191
    %p193 = scmp.eq.s32.totalorder %s20, 0
    %p194 = por %p192, %p193
    %s195 = ssub.s32 %s14, %s21
    %p196 = scmp.eq.s32.totalorder %s195, 0
    %s198 = sadd.s32 %s197, 1
    %s199 = scalar_select %p196, %s197, %s198
    %p202 = pneg %p196
    %p203 = scmp.eq.s32.totalorder %s14, 1
    %p204 = por %p202, %p203
    %p205 = scmp.ne.s32.totalorder %s197, %s200
    %p206 = scmp.eq.s32.totalorder %s14, 0
    %p207 = por %p205, %p206
    %p208 = scmp.ne.s32.totalorder %s197, %s200
    %p209 = scmp.eq.s32.totalorder %s19, 1
    %p210 = por %p208, %p209
    %p211 = scmp.ne.s32.totalorder %s200, %s201
    %p212 = scmp.eq.s32.totalorder %s19, 0
    %p213 = por %p211, %p212
    %p214 = scmp.ne.s32.totalorder %s200, %s201
    %p215 = scmp.eq.s32.totalorder %s20, 1
    %p216 = por %p214, %p215
    %p218 = scmp.ne.s32.totalorder %s201, %s217
    %p219 = scmp.eq.s32.totalorder %s20, 0
    %p220 = por %p218, %p219
    %p221 = scmp.le.s32.totalorder 1, %s14
    %p222 = scmp.lt.s32.totalorder %s14, 3
    %p223 = pnand %p221, %p222
    %p224 = pneg %p223
    // Predicated region
    $region9: #{residual_forward.1} parent=5 // pred_check
      _
    $region10: #{residual_forward.1} parent=5 // pred_check_branch
      %226 = sbr.rel (%p223) target = $region12
    $region11: #{residual_forward.1} parent=5 // pred_region
      %s227 = ssub.s32 %s14, 1
      // Predicated region
      $region13: #{residual_forward.1} parent=11 // pred_check
        %p228 = pneg %p61
      $region14: #{residual_forward.1} parent=11 // pred_check_branch
        %230 = sbr.rel (%p228) target = $region16
      $region15: #{residual_forward.1} parent=11 // pred_region
        _
      $region16: #{residual_forward.1} parent=11 // pred_fallthru
        _
      // Predicated region
      $region17: #{residual_forward.1} parent=11 // pred_check
        %p231 = pneg %p82
      $region18: #{residual_forward.1} parent=11 // pred_check_branch
        %233 = sbr.rel (%p231) target = $region20
      $region19: #{residual_forward.1} parent=11 // pred_region
        _
      $region20: #{residual_forward.1} parent=11 // pred_fallthru
        _
      // Predicated region
      $region21: #{residual_forward.1} parent=11 // pred_check
        %p234 = pneg %p103
      $region22: #{residual_forward.1} parent=11 // pred_check_branch
        %236 = sbr.rel (%p234) target = $region24
      $region23: #{residual_forward.1} parent=11 // pred_region
        _
      $region24: #{residual_forward.1} parent=11 // pred_fallthru
        _
      // Predicated region
      $region25: #{residual_forward.1} parent=11 // pred_check
        %p237 = pneg %p124
      $region26: #{residual_forward.1} parent=11 // pred_check_branch
        %239 = sbr.rel (%p237) target = $region28
      $region27: #{residual_forward.1} parent=11 // pred_region
        _
      $region28: #{residual_forward.1} parent=11 // pred_fallthru
        _
      // Predicated region
      $region29: #{residual_forward.1} parent=11 // pred_check
        %p240 = pneg %p145
      $region30: #{residual_forward.1} parent=11 // pred_check_branch
        %242 = sbr.rel (%p240) target = $region32
      $region31: #{residual_forward.1} parent=11 // pred_region
        _
      $region32: #{residual_forward.1} parent=11 // pred_fallthru
        _
      // Predicated region
      $region33: #{residual_forward.1} parent=11 // pred_check
        %p243 = pneg %p166
      $region34: #{residual_forward.1} parent=11 // pred_check_branch
        %245 = sbr.rel (%p243) target = $region36
      $region35: #{residual_forward.1} parent=11 // pred_region
        _
      $region36: #{residual_forward.1} parent=11 // pred_fallthru
        _
      // Predicated region
      $region37: #{residual_forward.1} parent=11 // pred_check
        %p246 = pneg %p187
      $region38: #{residual_forward.1} parent=11 // pred_check_branch
        %248 = sbr.rel (%p246) target = $region40
      $region39: #{residual_forward.1} parent=11 // pred_region
        _
      $region40: #{residual_forward.1} parent=11 // pred_fallthru
        _
    $region12: #{residual_forward.1} parent=5 // pred_fallthru
      _
    %p249 = scmp.lt.s32.totalorder %s14, 2
    // Predicated region
    $region41: #{residual_forward.1} parent=5 // pred_check
      %p250 = pneg %p249
    $region42: #{residual_forward.1} parent=5 // pred_check_branch
      %252 = sbr.rel (%p250) target = $region44
    $region43: #{residual_forward.1} parent=5 // pred_region
      // Predicated region
      $region45: #{residual_forward.1} parent=43 // pred_check
        %p253 = pneg %p34
      $region46: #{residual_forward.1} parent=43 // pred_check_branch
        %255 = sbr.rel (%p253) target = $region48
      $region47: #{residual_forward.1} parent=43 // pred_region
        %p256 = scmp.lt.s32.totalorder %s14, 1
        %s257 = scalar_select %p256, %s14, 1
        %s258 = smul.addr %s257, 8
        %s259 = scalar_lea.vmem %s0, %s258
      $region48: #{residual_forward.1} parent=43 // pred_fallthru
        _
    $region44: #{residual_forward.1} parent=5 // pred_fallthru
      _
    %p260 = scmp.le.s32.totalorder 1, %s14
    %p261 = scmp.lt.s32.totalorder %s14, 3
    %p262 = pnand %p260, %p261
    %p263 = pneg %p262
    // Predicated region
    $region49: #{residual_forward.1} parent=5 // pred_check
      _
    $region50: #{residual_forward.1} parent=5 // pred_check_branch
      %265 = sbr.rel (%p262) target = $region52
    $region51: #{residual_forward.1} parent=5 // pred_region
      %s266 = ssub.s32 %s14, 1
      %p267 = scmp.lt.s32.totalorder %s19, 1
      %s268 = scalar_select %p267, %s19, 1
      %s269 = smul.addr %s268, 8
      %s270 = scalar_lea.vmem %s0, %s269
      %p271 = pneg %p40
      %p272 = pneg %p37
      %p273 = pneg %p61
      %p274 = pneg %p58
      %p275 = pneg %p82
      %p276 = pneg %p79
      %p277 = pneg %p103
      %p278 = pneg %p100
      %p279 = pneg %p124
      %p280 = pneg %p121
      %p281 = pneg %p145
      %p282 = pneg %p142
      %p283 = pneg %p166
      %p284 = pneg %p163
      %p285 = pneg %p187
      %p286 = pneg %p184
      %p287 = pneg %p213
      %p288 = pneg %p210
      %p289 = scmp.lt.s32.totalorder %s19, 1
      %s290 = scalar_select %p289, %s19, 1
      %s291 = smul.addr %s290, 2
      %s292 = smul.addr %s291, 8
      %s293 = scalar_lea.vmem %s8, %s292
      %p294 = scmp.lt.s32.totalorder %s19, 1
      %s295 = scalar_select %p294, %s19, 1
      %s296 = smul.addr %s295, 8
      %s297 = scalar_lea.vmem %s0, %s296
      %p298 = scmp.lt.s32.totalorder %s19, 1
      %s299 = scalar_select %p298, %s19, 1
      %s300 = smul.addr %s299, 2
      %s301 = smul.addr %s300, 8
      %s302 = scalar_lea.vmem %s8, %s301
      %v303 = vld [vmem:[%s297] sm:$0xff]
      %304 = vrot.lane.b32.xlu0 %v303, 2
      %v305 = vpop.permute.xlu0 %304
      %306 = vrot.lane.b32.xlu0 %v303, 126
      %v307 = vpop.permute.xlu0 %306
      %v308 = vld [vmem:[%s3] sm:$0xff]
      %v309 = vld [vmem:[%s3 + $0x8] sm:$0xff]
      %v310 = vld [vmem:[%s3 + $0x10] sm:$0xff]
      %v311 = vmul.f32 %v305, %v308
      %v312 = vmul.f32 %v303, %v309
      %v313 = vmul.f32 %v307, %v310
      %v314 = vld [vmem:[%s1] sm:$0xff]
      %v315 = vld [vmem:[%s1 + $0x8] sm:$0xff]
      %v316 = vld [vmem:[%s2] sm:$0xff]
      %v317 = vld [vmem:[%s2 + $0x8] sm:$0xff]
      %vm318 = vcmask 195584
      %v320 = vsel %vm318, %v314, 0
      %v323 = vsel %vm318, %v315, 0
      %325 = vmatpush.msra.mxu0 0.0
      %326 = vmatpush.msra.mxu0 0.0
      %327 = vmatpush.msra.mxu0 0.0
      %328 = vmatpush.msra.mxu0 0.0
      %329 = vmatpush.msra.mxu0 0.0
      %330 = vmatpush.msra.mxu0 0.0
      %331 = vmatpush.msra.mxu0 0.0
      %332 = vmatpush.msra.mxu0 0.0
      %333 = vmatpush.msra.mxu0 0.0
      %334 = vmatpush.msra.mxu0 0.0
      %335 = vmatpush.msra.mxu0 0.0
      %336 = vmatpush.msra.mxu0 0.0
      %337 = vmatpush.msra.mxu0 0.0
      %338 = vmatpush.msra.mxu0 %v313
      %339 = vmatpush.msra.mxu0 %v312
      %340 = vmatpush.msra.mxu0 %v311
      %341 = vmatmul.f32.gmra.mxu0 %v320
      %v342 = vpop.f32.mrf.mxu0
      %v343 = vadd.f32 %v316, %v342
      %344 = vmatmul.f32.gmra.mxu0 %v323
      %v345 = vpop.f32.mrf.mxu0
      %v346 = vadd.f32 %v317, %v345
      %347 = vdwg.mxu0
      %v348 = vmul.f32 %v343, 0.5
      %v349 = vmul.f32 %v346, 0.5
      %v350 = vmul.f32 %v343, 0.044715
      %v351 = vmul.f32 %v346, 0.044715
      %v352 = vmul.f32 %v350, %v343
      %v353 = vmul.f32 %v351, %v346
      %v354 = vmul.f32 %v352, %v343
      %v355 = vmul.f32 %v353, %v346
      %v356 = vadd.f32 %v343, %v354
      %v357 = vadd.f32 %v346, %v355
      %v358 = vmul.f32 %v356, 0.7978846
      %v359 = vmul.f32 %v357, 0.7978846
      %v360 = vtanh.pop %v358
      %v361 = vtanh.pop %v359
      %v362 = vadd.f32 %v360, 1.0
      %v363 = vadd.f32 %v361, 1.0
      %v364 = vmul.f32 %v348, %v362
      %v365 = vmul.f32 %v349, %v363
      %366 = vadd.xlane.f32.xlu0 %v364
      %v367 = vpop.xlane.xlu0 %366
      %368 = vadd.xlane.f32.xlu0 %v365
      %v369 = vpop.xlane.xlu0 %368
      %v370 = vmul.f32 %v367, 0.0078125
      %v371 = vmul.f32 %v369, 0.0078125
      %v372 = vld [vmem:[%s4] sm:$0xf]
      %vm373 = vcmask 130048
      %v375 = vsel %vm373, %v372, 0
      %377 = vmatpush.msra.mxu0 0.0
      %378 = vmatpush.msra.mxu0 0.0
      %379 = vmatpush.msra.mxu0 0.0
      %380 = vmatpush.msra.mxu0 0.0
      %381 = vmatpush.msra.mxu0 0.0
      %382 = vmatpush.msra.mxu0 0.0
      %383 = vmatpush.msra.mxu0 0.0
      %384 = vmatpush.msra.mxu0 0.0
      %385 = vmatpush.msra.mxu0 0.0
      %386 = vmatpush.msra.mxu0 0.0
      %387 = vmatpush.msra.mxu0 0.0
      %388 = vmatpush.msra.mxu0 0.0
      %389 = vmatpush.msra.mxu0 0.0
      %390 = vmatpush.msra.mxu0 0.0
      %391 = vmatpush.msra.mxu0 %v371
      %392 = vmatpush.msra.mxu0 %v370
      %393 = vmatmul.f32.gmra.mxu0 %v375
      %v394 = vpop.f32.mrf.mxu0
      %v395 = vadd.f32 0.0, %v394
      %396 = vdwg.mxu0
      %v397 = vmul.f32 %v395, 0.5
      %v398 = vmul.f32 %v395, 0.044715
      %v399 = vmul.f32 %v398, %v395
      %v400 = vmul.f32 %v399, %v395
      %v401 = vadd.f32 %v395, %v400
      %v402 = vmul.f32 %v401, 0.7978846
      %v403 = vtanh.pop %v402
      %v404 = vadd.f32 %v403, 1.0
      %v405 = vmul.f32 %v397, %v404
      %v406 = vld [vmem:[%s5] sm:$0xff]
      %v407 = vld [vmem:[%s5 + $0x8] sm:$0xff]
      %vm408 = vcmask 31744
      %v410 = vsel %vm408, %v406, 0
      %v413 = vsel %vm408, %v407, 0
      %vm415 = vcmask 1043456
      %v417 = vsel %vm415, %v405, 0
      %419 = vmatpush.msra.mxu0 0.0
      %420 = vmatpush.msra.mxu0 0.0
      %421 = vmatpush.msra.mxu0 0.0
      %422 = vmatpush.msra.mxu0 0.0
      %423 = vmatpush.msra.mxu0 0.0
      %424 = vmatpush.msra.mxu0 0.0
      %425 = vmatpush.msra.mxu0 0.0
      %426 = vmatpush.msra.mxu0 0.0
      %427 = vmatpush.msra.mxu0 0.0
      %428 = vmatpush.msra.mxu0 0.0
      %429 = vmatpush.msra.mxu0 0.0
      %430 = vmatpush.msra.mxu0 0.0
      %431 = vmatpush.msra.mxu0 0.0
      %432 = vmatpush.msra.mxu0 0.0
      %433 = vmatpush.msra.mxu0 0.0
      %434 = vmatpush.msra.mxu0 %v417
      %435 = vmatmul.f32.gmra.mxu0 %v410
      %v436 = vpop.f32.mrf.mxu0
      %v437 = vadd.f32 0.0, %v436
      %438 = vmatmul.f32.gmra.mxu0 %v413
      %v439 = vpop.f32.mrf.mxu0
      %v440 = vadd.f32 0.0, %v439
      %441 = vdwg.mxu0
      %v442 = vxor.u32 %v437, 2147483648
      %v443 = vxor.u32 %v440, 2147483648
      %v444 = vmul.f32 %v442, 1.442695
      %v445 = vpow.pop %v444
      %v446 = vmul.f32 %v443, 1.442695
      %v447 = vpow.pop %v446
      %v448 = vadd.f32 %v445, 1.0
      %v449 = vadd.f32 %v447, 1.0
      %v450 = vrcp.pop %v448
      %v451 = vmul.f32 %v448, %v450
      %v452 = vsub.f32 1.0, %v451
      %v453 = vmul.f32 %v450, %v452
      %v454 = vadd.f32 %v450, %v453
      %vm455 = vweird.f32 %v448
      %vm456 = vweird.f32 %v450
      %vm457 = vmor %vm455, %vm456
      %v458 = vsel %vm457, %v450, %v454
      %v459 = vand.u32 2147483647, %v448
      %vm460 = vcmp.eq.f32.partialorder %v459, 8.507059e+37
      %v461 = vand.u32 %v448, 2147483648
      %v462 = vor.u32 1.1754944e-38, %v461
      %v463 = vsel %vm460, %v462, %v458
      %v464 = vmul.f32 1.0, %v463
      %v465 = vrcp.pop %v449
      %v466 = vmul.f32 %v449, %v465
      %v467 = vsub.f32 1.0, %v466
      %v468 = vmul.f32 %v465, %v467
      %v469 = vadd.f32 %v465, %v468
      %vm470 = vweird.f32 %v449
      %vm471 = vweird.f32 %v465
      %vm472 = vmor %vm470, %vm471
      %v473 = vsel %vm472, %v465, %v469
      %v474 = vand.u32 2147483647, %v449
      %vm475 = vcmp.eq.f32.partialorder %v474, 8.507059e+37
      %v476 = vand.u32 %v449, 2147483648
      %v477 = vor.u32 1.1754944e-38, %v476
      %v478 = vsel %vm475, %v477, %v473
      %v479 = vmul.f32 1.0, %v478
      %v480 = vmul.f32 %v364, %v464
      %v481 = vmul.f32 %v365, %v479
      %v482 = vld [vmem:[%s6] sm:$0xff]
      %v483 = vld [vmem:[%s6 + $0x8] sm:$0xff]
      %v484 = vld [vmem:[%s7] sm:$0xff]
      %v485 = vld [vmem:[%s7 + $0x8] sm:$0xff]
      %487 = vset.pattern.permute.xlu0 0
      %488 = vperm.xlu0 %487, %v484
      %v489 = vpop.permute.xlu0 %488
      %492 = vset.pattern.permute.xlu0 0
      %493 = vperm.xlu0 %492, %v485
      %v494 = vpop.permute.xlu0 %493
      %v497 = vsel %vm373, %v482, 0
      %v500 = vsel %vm373, %v483, 0
      %502 = vmatpush.msra.mxu0 0.0
      %503 = vmatpush.msra.mxu0 0.0
      %504 = vmatpush.msra.mxu0 0.0
      %505 = vmatpush.msra.mxu0 0.0
      %506 = vmatpush.msra.mxu0 0.0
      %507 = vmatpush.msra.mxu0 0.0
      %508 = vmatpush.msra.mxu0 0.0
      %509 = vmatpush.msra.mxu0 0.0
      %510 = vmatpush.msra.mxu0 0.0
      %511 = vmatpush.msra.mxu0 0.0
      %512 = vmatpush.msra.mxu0 0.0
      %513 = vmatpush.msra.mxu0 0.0
      %514 = vmatpush.msra.mxu0 0.0
      %515 = vmatpush.msra.mxu0 0.0
      %516 = vmatpush.msra.mxu0 %v481
      %517 = vmatpush.msra.mxu0 %v480
      %518 = vmatmul.f32.gmra.mxu0 %v497
      %v519 = vpop.f32.mrf.mxu0
      %v520 = vadd.f32 %v489, %v519
      %521 = vmatmul.f32.gmra.mxu0 %v500
      %v522 = vpop.f32.mrf.mxu0
      %v523 = vadd.f32 %v494, %v522
      %524 = vdwg.mxu0
      %v525 = vmul.f32 %v520, 0.5
      %v526 = vmul.f32 %v523, 0.5
      %v527 = vmul.f32 %v520, 0.044715
      %v528 = vmul.f32 %v523, 0.044715
      %v529 = vmul.f32 %v527, %v520
      %v530 = vmul.f32 %v528, %v523
      %v531 = vmul.f32 %v529, %v520
      %v532 = vmul.f32 %v530, %v523
      %v533 = vadd.f32 %v520, %v531
      %v534 = vadd.f32 %v523, %v532
      %v535 = vmul.f32 %v533, 0.7978846
      %v536 = vmul.f32 %v534, 0.7978846
      %v537 = vtanh.pop %v535
      %v538 = vtanh.pop %v536
      %v539 = vadd.f32 %v537, 1.0
      %v540 = vadd.f32 %v538, 1.0
      %v541 = vmul.f32 %v525, %v539
      %v542 = vmul.f32 %v526, %v540
      %v543 = vadd.f32 %v303, %v541
      %544 = vst [vmem:[%s302] sm:$0xff] %v543
      %545 = vst [vmem:[%s302 + $0x8] sm:$0xff] %v542
      %p546 = scmp.lt.s32.totalorder %s19, 1
      %s547 = scalar_select %p546, %s19, 1
      %s548 = smul.addr %s547, 2
      %s549 = smul.addr %s548, 8
      %s550 = scalar_lea.vmem %s8, %s549
      // Predicated region
      $region53: #{residual_forward.1} parent=51 // pred_check
        %p551 = pneg %p210
      $region54: #{residual_forward.1} parent=51 // pred_check_branch
        %553 = sbr.rel (%p551) target = $region56
      $region55: #{residual_forward.1} parent=51 // pred_region
        _
      $region56: #{residual_forward.1} parent=51 // pred_fallthru
        _
    $region52: #{residual_forward.1} parent=5 // pred_fallthru
      _
    %p554 = scmp.le.s32.totalorder 2, %s14
    // Predicated region
    $region57: #{residual_forward.1} parent=5 // pred_check
      %p555 = pneg %p554
    $region58: #{residual_forward.1} parent=5 // pred_check_branch
      %557 = sbr.rel (%p555) target = $region60
    $region59: #{residual_forward.1} parent=5 // pred_region
      %s558 = ssub.s32 %s14, 2
      // Predicated region
      $region61: #{residual_forward.1} parent=59 // pred_check
        %p559 = pneg %p216
      $region62: #{residual_forward.1} parent=59 // pred_check_branch
        %561 = sbr.rel (%p559) target = $region64
      $region63: #{residual_forward.1} parent=59 // pred_region
        %p562 = scmp.lt.s32.totalorder %s20, 1
        %s563 = scalar_select %p562, %s20, 1
        %s564 = smul.addr %s563, 2
        %s565 = smul.addr %s564, 8
        %s566 = scalar_lea.vmem %s8, %s565
      $region64: #{residual_forward.1} parent=59 // pred_fallthru
        _
    $region60: #{residual_forward.1} parent=5 // pred_fallthru
      _
  $region6: #{residual_forward.1} parent=0 // loop_footer
    %s18 = sadd.s32 1, %s14
  $region7: #{residual_forward.1} parent=0 // loop_footer_branch
    %13 = sbr.rel target = $region3
  $region8: #{residual_forward.1} parent=0 // loop_exit
    _

</llo_original>
